<compile_context>
chip_gen: v5e
topology: v5e:2x2
jax: 0.10.0
libtpu: 0.0.40
codegen_flags: <defaults>
</compile_context>

<pallas_src>
import functools

import jax
import jax.numpy as jnp
from jax.experimental import pallas as pl
from jax.experimental.pallas import tpu as pltpu


_MIB = 1024 * 1024


def _round_up(x, m):
    return ((x + m - 1) // m) * m


def _classifier_kernel(reps_ref, wt_ref, b_ref, logits_ref, emb_ref, acc_ref,
                       *, inv_s):
    """Streaming mean-pool over the sequence axis + linear head.

    reps_ref   : (TB, TS, D)   input tile (bf16 or f32)
    wt_ref     : (D, C_pad)    pre-transposed, zero-padded weight (resident)
    b_ref      : (1, C_pad)    zero-padded bias (resident)
    logits_ref : (TB, C_pad)   output tile (written at last seq step)
    emb_ref    : (TB, D)       output tile (written at last seq step)
    acc_ref    : (TB, D) f32   VMEM scratch accumulator
    """
    s = pl.program_id(1)

    @pl.when(s == 0)
    def _init():
        acc_ref[...] = jnp.zeros_like(acc_ref)

    # Accumulate the sequence sum in float32 regardless of the input dtype.
    acc_ref[...] += jnp.sum(reps_ref[...].astype(jnp.float32), axis=1)

    @pl.when(s == pl.num_programs(1) - 1)
    def _finalize():
        emb = acc_ref[...] * inv_s                      # mean over true S
        emb_ref[...] = emb.astype(emb_ref.dtype)
        # logits = emb @ W^T + b  (W already transposed + padded in the wrapper)
        logits = jnp.dot(emb, wt_ref[...], preferred_element_type=jnp.float32)
        logits_ref[...] = (logits + b_ref[...]).astype(logits_ref.dtype)


def _pick_vmem_limit():
    """Generation-aware VMEM scoped limit (bytes)."""
    try:
        cap = pltpu.get_tpu_info().vmem_capacity_bytes
    except Exception:
        cap = 64 * _MIB                     # conservative: v7x per-TC VMEM
    if cap <= 64 * _MIB:
        return 48 * _MIB                    # v7x: 64 MiB/TC physical
    return 96 * _MIB                        # v5e / v6e: 128 MiB physical


def _fixed_vmem_bytes(tb, D, c_pad):
    """Everything resident besides the streamed reps tiles."""
    return (2 * D * c_pad * 4          # weight, double-buffered by the pipeline
            + 2 * 8 * c_pad * 4        # bias block (sublane-padded)
            + 2 * tb * c_pad * 4       # logits output block
            + 2 * tb * D * 4           # embeddings output block
            + tb * D * 4)              # f32 accumulator scratch


def _pick_tiles(B, S, D, c_pad, itemsize, vmem_budget_bytes):
    """Choose (TB, TS) so the *full* VMEM footprint fits the budget."""
    # Batch tile: prefer grid[0] >= 2 (both v7x TensorCores active) while
    # keeping TB % 8 == 0; otherwise TB == B is always layout-legal.
    if B % 8 == 0 and B >= 16:
        tb = 8
    else:
        tb = B

    def fits(tb_, ts_):
        reps_bytes = 2 * tb_ * ts_ * D * itemsize
        return reps_bytes + _fixed_vmem_bytes(tb_, D, c_pad) <= vmem_budget_bytes

    # Sequence tile (multiple of 8; wrapper zero-pads S up to a multiple of it).
    if S <= 512:
        ts = _round_up(S, 8)
        if not fits(tb, ts):
            ts = next((c for c in (256, 128, 64, 32, 16, 8)
                       if c < ts and fits(tb, c)), 8)
    else:
        ts = next((c for c in (512, 384, 256, 128, 64, 32, 16, 8)
                   if fits(tb, c)), 8)

    # Once TS is healthy, grow TB (fewer grid steps, fatter finalize matmul).
    if ts >= 256:
        for cand in (32, 16):
            if B % cand == 0 and B // cand >= 2 and fits(cand, ts):
                tb = cand
                break
    return tb, ts


def prepare_head_params(w, b):
    """One-time parameter prep: transpose + lane-pad the Linear head.

    w : (C, D) torch.nn.Linear weight layout;  b : (C,)
    Returns (wt_pad (D, C_pad), b_pad (1, C_pad), C).
    """
    C, D = w.shape
    c_pad = _round_up(max(C, 1), 128)
    wt_pad = jnp.pad(jnp.asarray(w, jnp.float32).T, ((0, 0), (0, c_pad - C)))
    b_pad = jnp.pad(jnp.asarray(b, jnp.float32), (0, c_pad - C)).reshape(1, c_pad)
    return wt_pad, b_pad, C


def protein_classifier_head(reps, wt_pad, b_pad, num_classes, *,
                            tb=None, ts=None, vmem_limit_bytes=None):
    """Pallas call: (logits, embeddings) from layer-36 representations.

    reps   : (B, S, D) bf16 (preferred) or f32
    wt_pad : (D, C_pad) f32   (from prepare_head_params)
    b_pad  : (1, C_pad) f32
    """
    B, S, D = reps.shape
    c_pad = wt_pad.shape[1]
    assert wt_pad.shape[0] == D and b_pad.shape == (1, c_pad)

    if vmem_limit_bytes is None:
        vmem_limit_bytes = _pick_vmem_limit()
    budget = vmem_limit_bytes - 4 * _MIB          # headroom for internal scratch

    tb_auto, ts_auto = _pick_tiles(B, S, D, c_pad, reps.dtype.itemsize, budget)
    tb = tb if tb is not None else tb_auto
    ts = ts if ts is not None else ts_auto
    assert B % tb == 0, (B, tb)

    # Ragged S: zero-pad in the wrapper; the mean still divides by the true S.
    s_pad = _round_up(S, ts)
    if s_pad != S:
        reps = jnp.pad(reps, ((0, 0), (0, s_pad - S), (0, 0)))

    kernel = functools.partial(_classifier_kernel, inv_s=float(1.0 / S))

    grid = (B // tb, s_pad // ts)
    grid_spec = pltpu.PrefetchScalarGridSpec(
        num_scalar_prefetch=0,
        grid=grid,
        in_specs=[
            # reps streamed tile-by-tile over (batch, seq)
            pl.BlockSpec((tb, ts, D), lambda bi, si: (bi, si, 0)),
            # weight / bias resident in VMEM across the whole grid
            pl.BlockSpec((D, c_pad), lambda bi, si: (0, 0)),
            pl.BlockSpec((1, c_pad), lambda bi, si: (0, 0)),
        ],
        out_specs=[
            pl.BlockSpec((tb, c_pad), lambda bi, si: (bi, 0)),
            pl.BlockSpec((tb, D), lambda bi, si: (bi, 0)),
        ],
        scratch_shapes=[pltpu.VMEM((tb, D), jnp.float32)],
    )

    itemsize = reps.dtype.itemsize
    cost = pl.CostEstimate(
        flops=int(B * s_pad * D + 2 * B * D * c_pad),
        transcendentals=0,
        bytes_accessed=int(B * s_pad * D * itemsize
                           + D * c_pad * 4 + c_pad * 4
                           + B * D * 4 + B * c_pad * 4),
    )

    logits_pad, embeddings = pl.pallas_call(
        kernel,
        out_shape=(
            jax.ShapeDtypeStruct((B, c_pad), jnp.float32),   # padded logits
            jax.ShapeDtypeStruct((B, D), jnp.float32),       # embeddings
        ),
        grid_spec=grid_spec,
        compiler_params=pltpu.CompilerParams(
            dimension_semantics=("parallel", "arbitrary"),
            vmem_limit_bytes=int(vmem_limit_bytes),
        ),
        cost_estimate=cost,
    )(reps, wt_pad, b_pad)

    return logits_pad[:, :num_classes], embeddings


def protein_classifier_forward(tokens, esm_embed_table, head_params):
    """Full forward matching the PyTorch module semantics.

    tokens          : (B, S) int32
    esm_embed_table : (vocab, D) -- deterministic stand-in for the frozen ESM
                      backbone's layer-36 representations.
    head_params     : output of prepare_head_params(fc_w, fc_b) (precomputed
                      once at model-load time).
    """
    # TODO(synk): frozen ESM transformer backbone replaced by a deterministic
    # embedding lookup (plain-JAX glue producing reps in HBM, like the real
    # backbone would).
    reps = esm_embed_table[tokens].astype(jnp.bfloat16)   # stream reps as bf16
    wt_pad, b_pad, num_classes = head_params
    return protein_classifier_head(reps, wt_pad, b_pad, num_classes)


if __name__ == "__main__":
    # Small shapes consistent with the module's forward.
    B, S, D, C, VOCAB = 2, 16, 32, 5, 33

    key = jax.random.PRNGKey(0)
    k_tok, k_emb, k_w, k_b = jax.random.split(key, 4)

    tokens = jax.random.randint(k_tok, (B, S), 0, VOCAB, dtype=jnp.int32)
    esm_embed_table = jax.random.normal(k_emb, (VOCAB, D), dtype=jnp.float32)
    fc_w = jax.random.normal(k_w, (C, D), dtype=jnp.float32) * 0.05
    fc_b = jax.random.normal(k_b, (C,), dtype=jnp.float32) * 0.05

    # Head parameters prepared once (transpose + pad hoisted out of the call).
    head_params = prepare_head_params(fc_w, fc_b)
    wt_pad, b_pad, _ = head_params

    # --- Test A: bf16 streaming, multi-step sequence reduction (grid = (1, 2)).
    reps_a = esm_embed_table[tokens].astype(jnp.bfloat16)
    logits_a, emb_a = protein_classifier_head(reps_a, wt_pad, b_pad, C, ts=8)
    jax.block_until_ready((logits_a, emb_a))

    reps_a_f32 = reps_a.astype(jnp.float32)
    emb_ref_a = reps_a_f32.mean(axis=1)
    logits_ref_a = emb_ref_a @ fc_w.T + fc_b
    assert jnp.allclose(emb_a, emb_ref_a, atol=1e-4), "embeddings mismatch (A)"
    assert jnp.allclose(logits_a, logits_ref_a, rtol=2e-2, atol=2e-3), \
        "logits mismatch (A)"

    # --- Test B: full forward, ragged S (zero-padded in wrapper) and B=16 so
    #     the batch axis is tiled (tb=8, grid[0]=2 -> both v7x cores active).
    B2, S2 = 16, 13
    tokens_b = jax.random.randint(k_tok, (B2, S2), 0, VOCAB, dtype=jnp.int32)
    logits_b, emb_b = protein_classifier_forward(tokens_b, esm_embed_table,
                                                 head_params)
    jax.block_until_ready((logits_b, emb_b))

    reps_b_f32 = esm_embed_table[tokens_b].astype(jnp.bfloat16).astype(jnp.float32)
    emb_ref_b = reps_b_f32.mean(axis=1)
    logits_ref_b = emb_ref_b @ fc_w.T + fc_b
    assert jnp.allclose(emb_b, emb_ref_b, atol=1e-4), "embeddings mismatch (B)"
    assert jnp.allclose(logits_b, logits_ref_b, rtol=2e-2, atol=2e-3), \
        "logits mismatch (B)"

    print("KERNEL_OK")
</pallas_src>

<mosaic_0001>
module attributes {stable_mosaic.version = 11 : i64} {
  func.func @_classifier_kernel(%arg0: i32, %arg1: i32, %arg2: memref<2x8x32xbf16, #tpu.memory_space<vmem>>, %arg3: memref<32x128xf32, #tpu.memory_space<vmem>>, %arg4: memref<1x128xf32, #tpu.memory_space<vmem>>, %arg5: memref<2x128xf32, #tpu.memory_space<vmem>>, %arg6: memref<2x32xf32, #tpu.memory_space<vmem>>, %arg7: memref<2x32xf32, #tpu.memory_space<vmem>>) attributes {dimension_semantics = [#tpu.dimension_semantics<parallel>, #tpu.dimension_semantics<arbitrary>], iteration_bounds = array<i64: 1, 2>, scalar_prefetch = 0 : i64, scratch_operands = 1 : i64, tpu.core_type = #tpu.core_type<tc>, window_params = [{transform_indices = @transform_0, window_bounds = array<i64: 2, 8, 32>}, {pipeline_mode = #tpu.pipeline_mode<synchronous>, transform_indices = @transform_1, window_bounds = array<i64: 32, 128>}, {pipeline_mode = #tpu.pipeline_mode<synchronous>, transform_indices = @transform_2, window_bounds = array<i64: 1, 128>}, {transform_indices = @transform_3, window_bounds = array<i64: 2, 128>}, {transform_indices = @transform_4, window_bounds = array<i64: 2, 32>}]} {
    %c0_i32 = arith.constant 0 : i32
    %0 = arith.cmpi eq, %arg1, %c0_i32 : i32
    %1 = arith.extui %0 : i1 to i32
    %c0_i32_0 = arith.constant 0 : i32
    %2 = arith.cmpi ne, %1, %c0_i32_0 : i32
    scf.if %2 {
      %cst_8 = arith.constant 0.000000e+00 : f32
      %12 = vector.broadcast %cst_8 : f32 to vector<2x32xf32>
      %c0_9 = arith.constant 0 : index
      %c0_10 = arith.constant 0 : index
      %13 = vector.load %arg7[%c0_9, %c0_10] : memref<2x32xf32, #tpu.memory_space<vmem>>, vector<2x32xf32>
      tpu.vector_store %arg7[%c0_9, %c0_10], %12 {strides = array<i32>} : memref<2x32xf32, #tpu.memory_space<vmem>>, vector<2x32xf32>,
    } else {
    }
    %c0 = arith.constant 0 : index
    %c0_1 = arith.constant 0 : index
    %3 = vector.load %arg7[%c0, %c0_1] : memref<2x32xf32, #tpu.memory_space<vmem>>, vector<2x32xf32>
    %c0_2 = arith.constant 0 : index
    %c0_3 = arith.constant 0 : index
    %c0_4 = arith.constant 0 : index
    %4 = vector.load %arg2[%c0_2, %c0_3, %c0_4] : memref<2x8x32xbf16, #tpu.memory_space<vmem>>, vector<2x8x32xbf16>
    %5 = arith.extf %4 : vector<2x8x32xbf16> to vector<2x8x32xf32>
    %cst = arith.constant dense<0.000000e+00> : vector<2x32xf32>
    %6 = vector.multi_reduction <add>, %5, %cst [1] : vector<2x8x32xf32> to vector<2x32xf32>
    %7 = arith.addf %3, %6 : vector<2x32xf32>
    %c0_5 = arith.constant 0 : index
    %c0_6 = arith.constant 0 : index
    %8 = vector.load %arg7[%c0_5, %c0_6] : memref<2x32xf32, #tpu.memory_space<vmem>>, vector<2x32xf32>
    tpu.vector_store %arg7[%c0_5, %c0_6], %7 {strides = array<i32>} : memref<2x32xf32, #tpu.memory_space<vmem>>, vector<2x32xf32>,
    %c1_i32 = arith.constant 1 : i32
    %9 = arith.cmpi eq, %arg1, %c1_i32 : i32
    %10 = arith.extui %9 : i1 to i32
    %c0_i32_7 = arith.constant 0 : i32
    %11 = arith.cmpi ne, %10, %c0_i32_7 : i32
    scf.if %11 {
      %c0_8 = arith.constant 0 : index
      %c0_9 = arith.constant 0 : index
      %12 = vector.load %arg7[%c0_8, %c0_9] : memref<2x32xf32, #tpu.memory_space<vmem>>, vector<2x32xf32>
      %cst_10 = arith.constant 6.250000e-02 : f32
      %13 = vector.broadcast %cst_10 : f32 to vector<2x32xf32>
      %14 = arith.mulf %12, %13 : vector<2x32xf32>
      %c0_11 = arith.constant 0 : index
      %c0_12 = arith.constant 0 : index
      %15 = vector.load %arg6[%c0_11, %c0_12] : memref<2x32xf32, #tpu.memory_space<vmem>>, vector<2x32xf32>
      tpu.vector_store %arg6[%c0_11, %c0_12], %14 {strides = array<i32>} : memref<2x32xf32, #tpu.memory_space<vmem>>, vector<2x32xf32>,
      %c0_13 = arith.constant 0 : index
      %c0_14 = arith.constant 0 : index
      %16 = vector.load %arg3[%c0_13, %c0_14] : memref<32x128xf32, #tpu.memory_space<vmem>>, vector<32x128xf32>
      %cst_15 = arith.constant dense<0.000000e+00> : vector<2x128xf32>
      %17 = tpu.matmul %14, %16, %cst_15 {dimension_numbers = #tpu.dot_dimension_numbers<[1], [0], [0], [1], [0, 0, 1, 1], [], []>} : vector<2x32xf32>, vector<32x128xf32>, vector<2x128xf32> -> vector<2x128xf32>
      %c0_16 = arith.constant 0 : index
      %c0_17 = arith.constant 0 : index
      %18 = vector.load %arg4[%c0_16, %c0_17] : memref<1x128xf32, #tpu.memory_space<vmem>>, vector<1x128xf32>
      %19 = vector.broadcast %18 : vector<1x128xf32> to vector<2x128xf32>
      %20 = arith.addf %17, %19 : vector<2x128xf32>
      %c0_18 = arith.constant 0 : index
      %c0_19 = arith.constant 0 : index
      %21 = vector.load %arg5[%c0_18, %c0_19] : memref<2x128xf32, #tpu.memory_space<vmem>>, vector<2x128xf32>
      tpu.vector_store %arg5[%c0_18, %c0_19], %20 {strides = array<i32>} : memref<2x128xf32, #tpu.memory_space<vmem>>, vector<2x128xf32>,
    } else {
    }
    return
  }
  func.func @transform_0(%arg0: i32, %arg1: i32) -> (i32, i32, i32) {
    %c0_i32 = arith.constant 0 : i32
    %c0_i32_0 = arith.constant 0 : i32
    return %arg0, %arg1, %c0_i32 : i32, i32, i32
  }
  func.func @transform_1(%arg0: i32, %arg1: i32) -> (i32, i32) {
    %c0_i32 = arith.constant 0 : i32
    %c0_i32_0 = arith.constant 0 : i32
    %c0_i32_1 = arith.constant 0 : i32
    return %c0_i32, %c0_i32_0 : i32, i32
  }
  func.func @transform_2(%arg0: i32, %arg1: i32) -> (i32, i32) {
    %c0_i32 = arith.constant 0 : i32
    %c0_i32_0 = arith.constant 0 : i32
    %c0_i32_1 = arith.constant 0 : i32
    return %c0_i32, %c0_i32_0 : i32, i32
  }
  func.func @transform_3(%arg0: i32, %arg1: i32) -> (i32, i32) {
    %c0_i32 = arith.constant 0 : i32
    %c0_i32_0 = arith.constant 0 : i32
    return %arg0, %c0_i32 : i32, i32
  }
  func.func @transform_4(%arg0: i32, %arg1: i32) -> (i32, i32) {
    %c0_i32 = arith.constant 0 : i32
    %c0_i32_0 = arith.constant 0 : i32
    return %arg0, %c0_i32 : i32, i32
  }
}

</mosaic_0001>

<llo_original>
// kernel: tpu_custom_call.1
$region0: #{tpu_custom_call.1}
  #allocation0 [shape = 'u32[]', space=smem, size = 0x4, offset = 0x4, fixed_abs, tag = 'smem constant byte address 0x4 - core index']
  #allocation1 [shape = 'u32[72,128]{1,0:T(1,128)}', space=vmem, size = 0x9000, scoped, tag = 'internal scratch']
  #allocation2 [shape = 'f32[2,32]{1,0:T(2,128)}', space=vmem, size = 0x400, scoped, tag = 'scratch operand']
  %s0 = inlined_call_operand.hbm [shape: bf16[2,16,32], index: 0, kind: input, shape index: {}]
  %s1 = inlined_call_operand.hbm [shape: f32[32,128], index: 1, kind: input, shape index: {}]
  %s2 = inlined_call_operand.vmem [shape: f32[1,128], index: 2, kind: input, shape index: {}]
  %s3 = inlined_call_operand.hbm [shape: f32[2,128], index: 3, kind: output, shape index: {0}]
  %s4 = inlined_call_operand.hbm [shape: f32[2,32], index: 4, kind: output, shape index: {1}]
  %5 = xla_tuple %s3, %s4
  %s6 = sld [smem:[#allocation0]]
  $region69: #{tpu_custom_call.1} parent=0
    _
  %s8 = ssub.s32 1, %s6
  %s9 = scalar_select 0, %s8, %s6
  $region1: #{tpu_custom_call.1} parent=0
    #allocation3 [shape = 'u8[8192]{0}', space=vmem, size = 0x2000, scoped, tag = 'input window, operand 0']
    #allocation4 [shape = 's32[2]{0}', space=sflag, size = 0x8, scoped, tag = 'scoped memory for tpu_custom_call.1']
    #allocation5 [shape = 's32[2]{0}', space=sflag, size = 0x8, scoped, tag = 'scoped memory for tpu_custom_call.1']
    #allocation6 [shape = 'u8[16384]{0}', space=vmem, size = 0x4000, scoped, tag = 'input window, operand 1, single buffered']
    #allocation7 [shape = 's32[1]{0}', space=sflag, size = 0x4, scoped, tag = 'scoped memory for tpu_custom_call.1']
    #allocation8 [shape = 'u8[1024]{0}', space=vmem, size = 0x400, scoped, tag = 'output window, operand 0, single buffered']
    #allocation9 [shape = 'u8[1024]{0}', space=vmem, size = 0x400, scoped, tag = 'output window, operand 1, single buffered']
    #allocation10 [shape = 's32[1]{0}', space=sflag, size = 0x4, scoped, tag = 'scoped memory for tpu_custom_call.1']
    %10 = vsyncpa [#allocation4], 0
    %s11 = scalar_lea.sflag [#allocation4], 1
    %12 = vsyncpa %s11, 0
    %13 = vsyncpa [#allocation7], 0
    %14 = vsyncpa [#allocation5], 0
    %15 = vsyncpa [#allocation10], 0
    loop: start=0, step=1, limit=4
    $region2: #{tpu_custom_call.1} parent=1 // loop_pre_header
      _
    $region3: #{tpu_custom_call.1} parent=1 // loop_header
      %s17 = sphi 0, %s21
      %p18 = scmp.ge.s32.totalorder %s17, 4
      %s24 = sphi 0, %s36
      %s25 = sphi 0, %s32
      %s26 = sphi 0, %s24
      %s27 = sphi 0, %s25
      %s28 = sphi 0, %s26
      %s29 = sphi 0, %s27
      %s41 = sphi 0, %s43
      %s44 = sphi 0, %s41
      %s45 = sphi 0, %s44
      %s61 = sphi 0, %s45
      %s65 = sphi 0, %s65
      %s67 = sphi 0, %s65
      %s68 = sphi 0, %s67
      %s82 = sphi 0, %s68
      %s86 = sphi 0, %s86
      %s88 = sphi 0, %s86
      %s89 = sphi 0, %s88
      %s103 = sphi 0, %s89
      %s109 = sphi 0, %s111
      %s112 = sphi 0, %s109
      %s113 = sphi 0, %s112
      %s129 = sphi 0, %s113
      %s135 = sphi 0, %s137
      %s138 = sphi 0, %s135
      %s139 = sphi 0, %s138
      %s155 = sphi 0, %s139
    $region4: #{tpu_custom_call.1} parent=1 // loop_header_branch
      %20 = sbr.rel (%p18) target = $region8
    $region5: #{tpu_custom_call.1} parent=1 // loop_body
      %s22 = ssub.s32 %s17, 1
      %s23 = ssub.s32 %s17, 2
      %s30 = sadd.s32 1, %s25
      %p31 = scmp.ge.s32.totalorder %s30, 2
      %s32 = scalar_select %p31, 0, %s30
      %s33 = sadd.s32 1, %s24
      %s34 = scalar_select %p31, %s33, %s24
      %p35 = scmp.ge.s32.totalorder %s34, 1
      %s36 = scalar_select %p35, 0, %s34
      %s37 = ssub.s32 %s24, %s36
      %s38 = ssub.s32 %s25, %s32
      %s39 = sor.u32 %s37, %s38
      %p40 = scmp.eq.s32.totalorder %s39, 0
      %s42 = sadd.s32 %s41, 1
      %s43 = scalar_select %p40, %s41, %s42
      %p46 = pneg %p40
      %p47 = scmp.eq.s32.totalorder %s17, 1
      %p48 = por %p46, %p47
      %p49 = scmp.ne.s32.totalorder %s41, %s44
      %p50 = scmp.eq.s32.totalorder %s17, 0
      %p51 = por %p49, %p50
      %p52 = scmp.ne.s32.totalorder %s41, %s44
      %p53 = scmp.eq.s32.totalorder %s22, 1
      %p54 = por %p52, %p53
      %p55 = scmp.ne.s32.totalorder %s44, %s45
      %p56 = scmp.eq.s32.totalorder %s22, 0
      %p57 = por %p55, %p56
      %p58 = scmp.ne.s32.totalorder %s44, %s45
      %p59 = scmp.eq.s32.totalorder %s23, 1
      %p60 = por %p58, %p59
      %p62 = scmp.ne.s32.totalorder %s45, %s61
      %p63 = scmp.eq.s32.totalorder %s23, 0
      %p64 = por %p62, %p63
      %s66 = sadd.s32 %s65, 1
      %p69 = scmp.eq.s32.totalorder %s17, 1
      %p70 = scmp.ne.s32.totalorder %s65, %s67
      %p71 = scmp.eq.s32.totalorder %s17, 0
      %p72 = por %p70, %p71
      %p73 = scmp.ne.s32.totalorder %s65, %s67
      %p74 = scmp.eq.s32.totalorder %s22, 1
      %p75 = por %p73, %p74
      %p76 = scmp.ne.s32.totalorder %s67, %s68
      %p77 = scmp.eq.s32.totalorder %s22, 0
      %p78 = por %p76, %p77
      %p79 = scmp.ne.s32.totalorder %s67, %s68
      %p80 = scmp.eq.s32.totalorder %s23, 1
      %p81 = por %p79, %p80
      %p83 = scmp.ne.s32.totalorder %s68, %s82
      %p84 = scmp.eq.s32.totalorder %s23, 0
      %p85 = por %p83, %p84
      %s87 = sadd.s32 %s86, 1
      %p90 = scmp.eq.s32.totalorder %s17, 1
      %p91 = scmp.ne.s32.totalorder %s86, %s88
      %p92 = scmp.eq.s32.totalorder %s17, 0
      %p93 = por %p91, %p92
      %p94 = scmp.ne.s32.totalorder %s86, %s88
      %p95 = scmp.eq.s32.totalorder %s22, 1
      %p96 = por %p94, %p95
      %p97 = scmp.ne.s32.totalorder %s88, %s89
      %p98 = scmp.eq.s32.totalorder %s22, 0
      %p99 = por %p97, %p98
      %p100 = scmp.ne.s32.totalorder %s88, %s89
      %p101 = scmp.eq.s32.totalorder %s23, 1
      %p102 = por %p100, %p101
      %p104 = scmp.ne.s32.totalorder %s89, %s103
      %p105 = scmp.eq.s32.totalorder %s23, 0
      %p106 = por %p104, %p105
      %s107 = ssub.s32 %s24, %s36
      %p108 = scmp.eq.s32.totalorder %s107, 0
      %s110 = sadd.s32 %s109, 1
      %s111 = scalar_select %p108, %s109, %s110
      %p114 = pneg %p108
      %p115 = scmp.eq.s32.totalorder %s17, 1
      %p116 = por %p114, %p115
      %p117 = scmp.ne.s32.totalorder %s109, %s112
      %p118 = scmp.eq.s32.totalorder %s17, 0
      %p119 = por %p117, %p118
      %p120 = scmp.ne.s32.totalorder %s109, %s112
      %p121 = scmp.eq.s32.totalorder %s22, 1
      %p122 = por %p120, %p121
      %p123 = scmp.ne.s32.totalorder %s112, %s113
      %p124 = scmp.eq.s32.totalorder %s22, 0
      %p125 = por %p123, %p124
      %p126 = scmp.ne.s32.totalorder %s112, %s113
      %p127 = scmp.eq.s32.totalorder %s23, 1
      %p128 = por %p126, %p127
      %p130 = scmp.ne.s32.totalorder %s113, %s129
      %p131 = scmp.eq.s32.totalorder %s23, 0
      %p132 = por %p130, %p131
      %s133 = ssub.s32 %s24, %s36
      %p134 = scmp.eq.s32.totalorder %s133, 0
      %s136 = sadd.s32 %s135, 1
      %s137 = scalar_select %p134, %s135, %s136
      %p140 = pneg %p134
      %p141 = scmp.eq.s32.totalorder %s17, 1
      %p142 = por %p140, %p141
      %p143 = scmp.ne.s32.totalorder %s135, %s138
      %p144 = scmp.eq.s32.totalorder %s17, 0
      %p145 = por %p143, %p144
      %p146 = scmp.ne.s32.totalorder %s135, %s138
      %p147 = scmp.eq.s32.totalorder %s22, 1
      %p148 = por %p146, %p147
      %p149 = scmp.ne.s32.totalorder %s138, %s139
      %p150 = scmp.eq.s32.totalorder %s22, 0
      %p151 = por %p149, %p150
      %p152 = scmp.ne.s32.totalorder %s138, %s139
      %p153 = scmp.eq.s32.totalorder %s23, 1
      %p154 = por %p152, %p153
      %p156 = scmp.ne.s32.totalorder %s139, %s155
      %p157 = scmp.eq.s32.totalorder %s23, 0
      %p158 = por %p156, %p157
      %p159 = scmp.le.s32.totalorder 1, %s17
      %p160 = scmp.lt.s32.totalorder %s17, 3
      %p161 = pnand %p159, %p160
      %p162 = pneg %p161
      // Predicated region
      $region9: #{tpu_custom_call.1} parent=5 // pred_check
        _
      $region10: #{tpu_custom_call.1} parent=5 // pred_check_branch
        %164 = sbr.rel (%p161) target = $region12
      $region11: #{tpu_custom_call.1} parent=5 // pred_region
        %s165 = ssub.s32 %s17, 1
        // Predicated region
        $region13: #{tpu_custom_call.1} parent=11 // pred_check
          %p166 = pneg %p78
        $region14: #{tpu_custom_call.1} parent=11 // pred_check_branch
          %168 = sbr.rel (%p166) target = $region16
        $region15: #{tpu_custom_call.1} parent=11 // pred_region
          %170 = vsyncadd [#allocation7], 0
          %s171 = sshll.u32 %s1, 4
          %s172 = int_to_ptr.hbm [resolvable:$true] %s171
          %s173 = sshll.u32 [#allocation6], 4
          %s174 = int_to_ptr.vmem [resolvable:$true] %s173
          %179 = dma.hbm_to_vmem [thread:$0]  %s172, 512, %s174, [#allocation7], 128, 128, 8
        $region16: #{tpu_custom_call.1} parent=11 // pred_fallthru
          _
        // Predicated region
        $region17: #{tpu_custom_call.1} parent=11 // pred_check
          %p180 = pneg %p99
        $region18: #{tpu_custom_call.1} parent=11 // pred_check_branch
          %182 = sbr.rel (%p180) target = $region20
        $region19: #{tpu_custom_call.1} parent=11 // pred_region
          _
        $region20: #{tpu_custom_call.1} parent=11 // pred_fallthru
          _
      $region12: #{tpu_custom_call.1} parent=5 // pred_fallthru
        _
      %p183 = scmp.lt.s32.totalorder %s17, 2
      // Predicated region
      $region21: #{tpu_custom_call.1} parent=5 // pred_check
        %p184 = pneg %p183
      $region22: #{tpu_custom_call.1} parent=5 // pred_check_branch
        %186 = sbr.rel (%p184) target = $region24
      $region23: #{tpu_custom_call.1} parent=5 // pred_region
        // Predicated region
        $region25: #{tpu_custom_call.1} parent=23 // pred_check
          %p187 = pneg %p51
        $region26: #{tpu_custom_call.1} parent=23 // pred_check_branch
          %189 = sbr.rel (%p187) target = $region28
        $region27: #{tpu_custom_call.1} parent=23 // pred_region
          %s190 = sand.u32 %s41, 1
          %s191 = scalar_lea.sflag [#allocation4], %s190
          %s192 = sand.u32 %s41, 1
          %s193 = smul.addr %s192, 8
          %s194 = scalar_lea.vmem [#allocation3], %s193
          %s195 = smul.u32 2, %s24
          %197 = vsyncadd %s191, 0
          %s198 = smul.addr %s195, 2
          %s199 = sadd.s32 %s25, %s198
          %s200 = smul.addr %s199, 4
          %s201 = scalar_lea.hbm %s0, %s200
          %s202 = sshll.u32 %s201, 4
          %s203 = int_to_ptr.hbm [resolvable:$true] %s202
          %s204 = sshll.u32 %s194, 4
          %s205 = int_to_ptr.vmem [resolvable:$true] %s204
          %210 = dma.hbm_to_vmem [thread:$0]  %s203, 128, %s205, %s191, 128, 64, 4
        $region28: #{tpu_custom_call.1} parent=23 // pred_fallthru
          _
      $region24: #{tpu_custom_call.1} parent=5 // pred_fallthru
        _
      %p211 = scmp.le.s32.totalorder 1, %s17
      %p212 = scmp.lt.s32.totalorder %s17, 3
      %p213 = pnand %p211, %p212
      %p214 = pneg %p213
      // Predicated region
      $region29: #{tpu_custom_call.1} parent=5 // pred_check
        _
      $region30: #{tpu_custom_call.1} parent=5 // pred_check_branch
        %216 = sbr.rel (%p213) target = $region32
      $region31: #{tpu_custom_call.1} parent=5 // pred_region
        %s217 = ssub.s32 %s17, 1
        %s218 = sand.u32 %s44, 1
        %s219 = scalar_lea.sflag [#allocation4], %s218
        %s220 = sand.u32 %s44, 1
        %s221 = smul.addr %s220, 8
        %s222 = scalar_lea.vmem [#allocation3], %s221
        // Predicated region
        $region33: #{tpu_custom_call.1} parent=31 // pred_check
          %p223 = pneg %p57
        $region34: #{tpu_custom_call.1} parent=31 // pred_check_branch
          %225 = sbr.rel (%p223) target = $region36
        $region35: #{tpu_custom_call.1} parent=31 // pred_region
          %227 = dma.done %s219, 128
        $region36: #{tpu_custom_call.1} parent=31 // pred_fallthru
          _
        // Predicated region
        $region37: #{tpu_custom_call.1} parent=31 // pred_check
          %p228 = pneg %p78
        $region38: #{tpu_custom_call.1} parent=31 // pred_check_branch
          %230 = sbr.rel (%p228) target = $region40
        $region39: #{tpu_custom_call.1} parent=31 // pred_region
          %232 = dma.done [#allocation7], 512
        $region40: #{tpu_custom_call.1} parent=31 // pred_fallthru
          _
        %s233 = sand.u32 %s44, 1
        %s234 = scalar_lea.sflag [#allocation4], %s233
        %s235 = sand.u32 %s44, 1
        %s236 = smul.addr %s235, 8
        %s237 = scalar_lea.vmem [#allocation3], %s236
        %p238 = pneg %p57
        %p239 = pneg %p54
        %p240 = pneg %p78
        %p241 = pneg %p75
        %p242 = pneg %p99
        %p243 = pneg %p96
        %p244 = pneg %p125
        %p245 = pneg %p122
        %p246 = pneg %p151
        %p247 = pneg %p148
        %s248 = smul.u32 2, %s26
        %p249 = scmp.eq.s32.totalorder %s27, 0
        // Predicated region
        $region41: #{tpu_custom_call.1} parent=31 // pred_check
          %p250 = pneg %p249
        $region42: #{tpu_custom_call.1} parent=31 // pred_check_branch
          %252 = sbr.rel (%p250) target = $region44
        $region43: #{tpu_custom_call.1} parent=31 // pred_region
          %vm253 = vcmask 254976
          %254 = vst.msk [vmem:[#allocation2] sm:$0x3] %vm253, 0.0
        $region44: #{tpu_custom_call.1} parent=31 // pred_fallthru
          _
        %v255 = vld [vmem:[#allocation2] sm:$0x3]
        %v256 = vld [vmem:[%s222] sm:$0xf]
        %v257 = vld [vmem:[%s222 + $0x4] sm:$0xf]
        %v258 = vunpack.c.l.bf16 %v256
        %v259 = vunpack.c.l.bf16 %v257
        %vm260 = vcmask 261120
        %v261 = vsel %vm260, %v258, 0.0
        %v262 = vrot.slane %v261, 4
        %v263 = vadd.f32 %v261, %v262
        %v264 = vrot.slane %v263, 2
        %v265 = vadd.f32 %v263, %v264
        %v266 = vrot.slane %v265, 1
        %v267 = vadd.f32 %v265, %v266
        %v268 = vsel %vm260, %v259, 0.0
        %v269 = vrot.slane %v268, 4
        %v270 = vadd.f32 %v268, %v269
        %v271 = vrot.slane %v270, 2
        %v272 = vadd.f32 %v270, %v271
        %v273 = vrot.slane %v272, 1
        %v274 = vadd.f32 %v272, %v273
        %vm277 = vcmask 1041409
        %v278 = vsel %vm277, %v274, %v267
        %v280 = vadd.f32 %v255, %v278
        %vm281 = vcmask 254976
        %282 = vst.msk [vmem:[#allocation2] sm:$0x3] %vm281, %v280
        %p283 = scmp.eq.s32.totalorder %s27, 1
        // Predicated region
        $region45: #{tpu_custom_call.1} parent=31 // pred_check
          %p284 = pneg %p283
        $region46: #{tpu_custom_call.1} parent=31 // pred_check_branch
          %286 = sbr.rel (%p284) target = $region48
        $region47: #{tpu_custom_call.1} parent=31 // pred_region
          %v287 = vld [vmem:[#allocation2] sm:$0x3]
          %v288 = vmul.f32 %v287, 0.0625
          %289 = vst.msk [vmem:[#allocation9] sm:$0x3] %vm281, %v288
          %v290 = vld [vmem:[#allocation6] sm:$0xff]
          %v291 = vld [vmem:[#allocation6 + $0x8] sm:$0xff]
          %v292 = vld [vmem:[#allocation6 + $0x10] sm:$0xff]
          %v293 = vld [vmem:[#allocation6 + $0x18] sm:$0xff]
          %v294 = vld [vmem:[%s2] sm:$0x1]
          %v296 = vperm.slane %v294, 0
          %v299 = vsel %vm260, %v288, 0
          %301 = vmatpush.msra.mxu0 0.0
          %302 = vmatpush.msra.mxu0 0.0
          %303 = vmatpush.msra.mxu0 0.0
          %304 = vmatpush.msra.mxu0 0.0
          %305 = vmatpush.msra.mxu0 0.0
          %306 = vmatpush.msra.mxu0 0.0
          %307 = vmatpush.msra.mxu0 0.0
          %308 = vmatpush.msra.mxu0 0.0
          %309 = vmatpush.msra.mxu0 0.0
          %310 = vmatpush.msra.mxu0 0.0
          %311 = vmatpush.msra.mxu0 0.0
          %312 = vmatpush.msra.mxu0 0.0
          %313 = vmatpush.msra.mxu0 %v293
          %314 = vmatpush.msra.mxu0 %v292
          %315 = vmatpush.msra.mxu0 %v291
          %316 = vmatpush.msra.mxu0 %v290
          %317 = vmatmul.f32.gmra.mxu0 %v299
          %v318 = vpop.f32.mrf.mxu0
          %v319 = vadd.f32 %v296, %v318
          %320 = vdwg.mxu0
          %321 = vst [vmem:[#allocation8] sm:$0x3] %v319
        $region48: #{tpu_custom_call.1} parent=31 // pred_fallthru
          _
        // Predicated region
        $region49: #{tpu_custom_call.1} parent=31 // pred_check
          %p322 = pneg %p122
        $region50: #{tpu_custom_call.1} parent=31 // pred_check_branch
          %324 = sbr.rel (%p322) target = $region52
        $region51: #{tpu_custom_call.1} parent=31 // pred_region
          %326 = vsyncadd [#allocation5], 0
          %s327 = smul.addr %s26, 2
          %s328 = scalar_lea.hbm %s3, %s327
          %s330 = sshll.u32 [#allocation8], 4
          %s331 = int_to_ptr.vmem [resolvable:$true] %s330
          %s332 = sshll.u32 %s328, 4
          %s333 = int_to_ptr.hbm [resolvable:$true] %s332
          %335 = dma.vmem_to_hbm [thread:$0]  %s331, 32, %s333, [#allocation5]
        $region52: #{tpu_custom_call.1} parent=31 // pred_fallthru
          _
        // Predicated region
        $region53: #{tpu_custom_call.1} parent=31 // pred_check
          %p336 = pneg %p148
        $region54: #{tpu_custom_call.1} parent=31 // pred_check_branch
          %338 = sbr.rel (%p336) target = $region56
        $region55: #{tpu_custom_call.1} parent=31 // pred_region
          %340 = vsyncadd [#allocation10], 0
          %s341 = smul.addr %s26, 2
          %s342 = scalar_lea.hbm %s4, %s341
          %s344 = sshll.u32 [#allocation9], 4
          %s345 = int_to_ptr.vmem [resolvable:$true] %s344
          %s346 = sshll.u32 %s342, 4
          %s347 = int_to_ptr.hbm [resolvable:$true] %s346
          %349 = dma.vmem_to_hbm [thread:$0]  %s345, 32, %s347, [#allocation10]
        $region56: #{tpu_custom_call.1} parent=31 // pred_fallthru
          _
        // Predicated region
        $region57: #{tpu_custom_call.1} parent=31 // pred_check
          %p350 = pneg %p122
        $region58: #{tpu_custom_call.1} parent=31 // pred_check_branch
          %352 = sbr.rel (%p350) target = $region60
        $region59: #{tpu_custom_call.1} parent=31 // pred_region
          %354 = dma.done [#allocation5], 32
        $region60: #{tpu_custom_call.1} parent=31 // pred_fallthru
          _
        // Predicated region
        $region61: #{tpu_custom_call.1} parent=31 // pred_check
          %p355 = pneg %p148
        $region62: #{tpu_custom_call.1} parent=31 // pred_check_branch
          %357 = sbr.rel (%p355) target = $region64
        $region63: #{tpu_custom_call.1} parent=31 // pred_region
          %359 = dma.done [#allocation10], 32
        $region64: #{tpu_custom_call.1} parent=31 // pred_fallthru
          _
      $region32: #{tpu_custom_call.1} parent=5 // pred_fallthru
        _
      %p360 = scmp.le.s32.totalorder 2, %s17
      // Predicated region
      $region65: #{tpu_custom_call.1} parent=5 // pred_check
        %p361 = pneg %p360
      $region66: #{tpu_custom_call.1} parent=5 // pred_check_branch
        %363 = sbr.rel (%p361) target = $region68
      $region67: #{tpu_custom_call.1} parent=5 // pred_region
        %s364 = ssub.s32 %s17, 2
      $region68: #{tpu_custom_call.1} parent=5 // pred_fallthru
        _
    $region6: #{tpu_custom_call.1} parent=1 // loop_footer
      %s21 = sadd.s32 1, %s17
    $region7: #{tpu_custom_call.1} parent=1 // loop_footer_branch
      %16 = sbr.rel target = $region3
    $region8: #{tpu_custom_call.1} parent=1 // loop_exit
      _
    %365 = vsyncpa [#allocation4], 1
    %s366 = scalar_lea.sflag [#allocation4], 1
    %367 = vsyncpa %s366, 1
    %368 = vsyncpa [#allocation7], 1
    %369 = vsyncpa [#allocation5], 1
    %s370 = scalar_lea.sflag [#allocation5], 1
    %371 = vsyncpa %s370, 1
    %372 = vsyncpa [#allocation10], 1

</llo_original>
